<compile_context>
chip_gen: v6e
topology: v6e:2x2x1
jax: 0.10.0
libtpu: 0.0.40
codegen_flags: <defaults>
</compile_context>

<pallas_src>
import functools

import jax
import jax.numpy as jnp
from jax.experimental import pallas as pl
from jax.experimental.pallas import tpu as pltpu


def _round_up(x, m):
    return ((x + m - 1) // m) * m


@functools.lru_cache(maxsize=1)
def _tpu_vmem_and_tile_cap():
    """Returns (vmem_limit cap in bytes, batch-tile cap) for this TPU generation."""
    phys = None
    try:
        phys = getattr(pltpu.get_tpu_info(), "vmem_capacity_bytes", None)
    except Exception:
        phys = None
    if not phys:
        phys = 64 * 1024 * 1024  # conservative fallback: v7x per-TC VMEM
    kind = ""
    try:
        kind = jax.devices()[0].device_kind.lower()
    except Exception:
        pass
    # v5e and older: 128-row MXU already filled at 128; v6e/v7x: 256-wide MXU.
    tile_b_cap = 128 if any(t in kind for t in ("v2", "v3", "v4", "v5")) else 256
    return int(phys * 3 // 4), tile_b_cap


def _choose_tile_b(batch, cap):
    """Largest sublane-aligned batch tile <= cap that minimises batch padding."""
    b8 = _round_up(batch, 8)
    if b8 <= cap:
        return b8
    best_pad, best_t = None, cap
    for t in range(cap, 7, -8):
        pad = _round_up(batch, t) - batch
        if best_pad is None or pad < best_pad:
            best_pad, best_t = pad, t
    return best_t


def _refined_recip(x):
    # EUP approximate reciprocal + one Newton-Raphson step -> ~f32-exact 1/x.
    r = pl.reciprocal(x, approx=True)
    return r * (2.0 - x * r)


# -----------------------------------------------------------------------------
# Kernel
# -----------------------------------------------------------------------------
def _slstm_kernel(xh_ref, state_ref, w_ref, b_ref, out_ref):
    tn = b_ref.shape[1] // 4  # hidden-column tile width (multiple of 128)

    # Single fused MXU matmul (bf16 or f32 operands, f32 accumulation) + bias.
    gates = jnp.dot(xh_ref[...], w_ref[...],
                    preferred_element_type=jnp.float32) + b_ref[...]

    z_tilda = gates[:, 0 * tn:1 * tn]
    i_tilda = gates[:, 1 * tn:2 * tn]
    f_tilda = gates[:, 2 * tn:3 * tn]
    o_tilda = gates[:, 3 * tn:4 * tn]

    c = state_ref[0]
    n = state_ref[1]
    m = state_ref[2]

    z_t = jnp.tanh(z_tilda)
    o_t = jax.nn.sigmoid(o_tilda)

    # One shared exp(-|f|) feeds both sigmoid(f) and log(sigmoid(f)).
    e = jnp.exp(-jnp.abs(f_tilda))
    inv_1pe = _refined_recip(1.0 + e)
    f_t = jnp.where(f_tilda >= 0.0, inv_1pe, e * inv_1pe)
    log_f = jnp.minimum(f_tilda, 0.0) - jnp.log1p(e)

    # Stabilized exponential gating: identical to
    # max(log(sigmoid(f)) + m, log(exp(i))) without the exp/log round trips.
    m_t = jnp.maximum(log_f + m, i_tilda)
    i_prime = jnp.exp(i_tilda - m_t)

    c_t = f_t * c + i_prime * z_t
    n_t = f_t * n + i_prime
    h_t = o_t * (c_t * _refined_recip(n_t))

    out_ref[0] = h_t
    out_ref[1] = c_t
    out_ref[2] = n_t
    out_ref[3] = m_t


# -----------------------------------------------------------------------------
# One-time parameter preparation (hoisted out of the per-step path)
# -----------------------------------------------------------------------------
def _pad_gate_axis(a, hidden, hidden_pad):
    """Zero-pad the trailing 4*hidden axis per-gate up to 4*hidden_pad."""
    if hidden == hidden_pad:
        return a
    pad = [(0, 0)] * (a.ndim - 1) + [(0, hidden_pad - hidden)]
    parts = [jnp.pad(a[..., g * hidden:(g + 1) * hidden], pad) for g in range(4)]
    return jnp.concatenate(parts, axis=-1)


def _permute_gate_columns(a, hidden_pad, tn):
    """[..., 4*Hp] laid out [z|i|f|o] -> per hidden-tile blocks [z_j|i_j|f_j|o_j]."""
    nct = hidden_pad // tn
    if nct == 1:
        return a
    lead = a.shape[:-1]
    a = a.reshape(*lead, 4, nct, tn)
    a = jnp.swapaxes(a, -3, -2)
    return a.reshape(*lead, 4 * hidden_pad)


def prepare_slstm_params(W, B_bias, *, matmul_dtype=jnp.bfloat16, col_tile_cap=512):
    """Pad / permute / cast the weights ONCE.  Do not call per timestep."""
    k, four_h = W.shape
    hidden = four_h // 4
    hidden_pad = _round_up(hidden, 128)

    tn = hidden_pad
    if tn > col_tile_cap:
        tn = (col_tile_cap // 128) * 128
        while hidden_pad % tn:
            tn -= 128

    w_p = _pad_gate_axis(W.astype(jnp.float32), hidden, hidden_pad)
    b_p = _pad_gate_axis(B_bias.astype(jnp.float32).reshape(1, -1), hidden, hidden_pad)
    w_p = _permute_gate_columns(w_p, hidden_pad, tn).astype(matmul_dtype)
    b_p = _permute_gate_columns(b_p, hidden_pad, tn)  # bias stays f32

    return {"w": w_p, "b": b_p, "hidden": hidden, "hidden_pad": hidden_pad,
            "tn": tn, "k": k}


# -----------------------------------------------------------------------------
# Forward wrapper
# -----------------------------------------------------------------------------
def slstm_cell_forward(x, state, params):
    """Pallas sLSTMCell forward.

    x:      [batch, input_size]
    state:  (h, c, n, m), each [batch, hidden]
    params: output of prepare_slstm_params(W, B)
    returns (h_t, (h_t, c_t, n_t, m_t)), all f32 [batch, hidden]
    """
    h, c, n, m = state
    batch, input_size = x.shape
    hidden, hidden_pad, tn, k = (params["hidden"], params["hidden_pad"],
                                 params["tn"], params["k"])
    assert k == input_size + hidden
    w_p, b_p = params["w"], params["b"]
    matmul_dtype = w_p.dtype

    f32 = jnp.float32
    x, h, c, n, m = (a.astype(f32) for a in (x, h, c, n, m))

    vmem_cap, tile_b_cap = _tpu_vmem_and_tile_cap()
    tile_b = _choose_tile_b(batch, tile_b_cap)
    batch_pad = _round_up(batch, tile_b)

    # Fused-matmul operand: cat(x, h), cast once to the matmul dtype.
    xh = jnp.concatenate((x, h), axis=1).astype(matmul_dtype)
    xh = jnp.pad(xh, ((0, batch_pad - batch), (0, 0)))

    def pad_state(s):
        return jnp.pad(s, ((0, batch_pad - batch), (0, hidden_pad - hidden)))

    # Pack c, n, m into one array -> one input DMA per grid step.
    state_p = jnp.stack([pad_state(c), pad_state(n), pad_state(m)], axis=0)

    n_col = hidden_pad // tn
    grid = (batch_pad // tile_b, n_col)

    in_specs = [
        # xh block index constant in j -> fetched once per batch tile.
        pl.BlockSpec((tile_b, k), lambda i, j: (i, 0)),
        pl.BlockSpec((3, tile_b, tn), lambda i, j: (0, i, j)),
        # W / bias column blocks: all four gates for hidden slice j.
        pl.BlockSpec((k, 4 * tn), lambda i, j: (0, j)),
        pl.BlockSpec((1, 4 * tn), lambda i, j: (0, j)),
    ]
    out_specs = pl.BlockSpec((4, tile_b, tn), lambda i, j: (0, i, j))
    out_sds = jax.ShapeDtypeStruct((4, batch_pad, hidden_pad), jnp.float32)

    # VMEM budget (double-buffered tiles), generation-aware cap.
    mm_bytes = jnp.dtype(matmul_dtype).itemsize
    est = (2 * tile_b * k * mm_bytes          # xh tiles
           + 2 * 3 * tile_b * tn * 4          # packed state tiles
           + 2 * k * 4 * tn * mm_bytes        # W column blocks
           + 2 * 1 * 4 * tn * 4               # bias
           + 2 * 4 * tile_b * tn * 4          # packed output tiles
           + 4 * tile_b * 4 * tn * 4)         # gates + epilogue temporaries
    vmem_limit = int(min(max(2 * est, 16 * 1024 * 1024), vmem_cap))

    cost = pl.CostEstimate(
        flops=2 * batch_pad * k * 4 * hidden_pad,
        transcendentals=7 * batch_pad * hidden_pad,
        bytes_accessed=(batch_pad * k * mm_bytes
                        + k * 4 * hidden_pad * mm_bytes
                        + 4 * (3 * batch_pad * hidden_pad
                               + 4 * hidden_pad
                               + 4 * batch_pad * hidden_pad)),
    )

    out = pl.pallas_call(
        _slstm_kernel,
        out_shape=out_sds,
        grid_spec=pltpu.PrefetchScalarGridSpec(
            num_scalar_prefetch=0,
            grid=grid,
            in_specs=in_specs,
            out_specs=out_specs,
        ),
        compiler_params=pltpu.CompilerParams(
            dimension_semantics=("parallel", "parallel"),
            vmem_limit_bytes=vmem_limit,
        ),
        cost_estimate=cost,
    )(xh, state_p, w_p, b_p)

    h_t = out[0, :batch, :hidden]
    c_t = out[1, :batch, :hidden]
    n_t = out[2, :batch, :hidden]
    m_t = out[3, :batch, :hidden]
    return h_t, (h_t, c_t, n_t, m_t)


# -----------------------------------------------------------------------------
# Pure-JAX reference (mirrors the torch module exactly)
# -----------------------------------------------------------------------------
def _reference_forward(x, state, W, B_bias):
    h, c, n, m = state
    combined = jnp.concatenate((x, h), axis=1)
    gates = combined @ W + B_bias
    z_tilda, i_tilda, f_tilda, o_tilda = jnp.split(gates, 4, axis=1)
    z_t = jnp.tanh(z_tilda)
    i_t = jnp.exp(i_tilda)
    f_t = jax.nn.sigmoid(f_tilda)
    o_t = jax.nn.sigmoid(o_tilda)
    m_t = jnp.maximum(jnp.log(f_t) + m, jnp.log(i_t))
    i_prime = jnp.exp(i_tilda - m_t)
    c_t = f_t * c + i_prime * z_t
    n_t = f_t * n + i_prime
    h_t = o_t * (c_t / n_t)
    return h_t, (h_t, c_t, n_t, m_t)


if __name__ == "__main__":
    batch = 32
    input_size = 16
    hidden_size = 32

    key = jax.random.PRNGKey(0)
    k_x, k_h, k_c, k_n, k_m, k_w = jax.random.split(key, 6)

    x = jax.random.normal(k_x, (batch, input_size), dtype=jnp.float32)
    # Non-trivial internal state so the exp-gating path is exercised.
    h = 0.1 * jax.random.normal(k_h, (batch, hidden_size), dtype=jnp.float32)
    c = 0.1 * jax.random.normal(k_c, (batch, hidden_size), dtype=jnp.float32)
    n = jnp.abs(0.1 * jax.random.normal(k_n, (batch, hidden_size), dtype=jnp.float32)) + 1.0
    m = jnp.zeros((batch, hidden_size), dtype=jnp.float32)
    state = (h, c, n, m)

    # Deterministic xavier_uniform-style init for W, zeros for bias.
    fan_in = input_size + hidden_size
    fan_out = 4 * hidden_size
    bound = (6.0 / (fan_in + fan_out)) ** 0.5
    W = jax.random.uniform(k_w, (fan_in, fan_out), dtype=jnp.float32,
                           minval=-bound, maxval=bound)
    B_bias = jnp.zeros((fan_out,), dtype=jnp.float32)

    h_ref, (_, c_ref, n_ref_, m_ref_) = _reference_forward(x, state, W, B_bias)

    # 1) f32-operand path: tight check of the kernel semantics.
    params_f32 = prepare_slstm_params(W, B_bias, matmul_dtype=jnp.float32)
    h_t, (_, c_t, n_t, m_t) = slstm_cell_forward(x, state, params_f32)
    jax.block_until_ready((h_t, c_t, n_t, m_t))
    for got, ref in ((h_t, h_ref), (c_t, c_ref), (n_t, n_ref_), (m_t, m_ref_)):
        assert jnp.allclose(got, ref, atol=1e-4, rtol=1e-4)

    # 2) Production path: bf16 MXU operands, f32 accumulation + f32 epilogue.
    params_bf16 = prepare_slstm_params(W, B_bias, matmul_dtype=jnp.bfloat16)
    h_b, (_, c_b, n_b, m_b) = slstm_cell_forward(x, state, params_bf16)
    jax.block_until_ready((h_b, c_b, n_b, m_b))
    for got, ref in ((h_b, h_ref), (c_b, c_ref), (n_b, n_ref_), (m_b, m_ref_)):
        assert jnp.allclose(got, ref, atol=5e-2, rtol=5e-2)

    print("KERNEL_OK")
</pallas_src>

<mosaic_0001>
module attributes {stable_mosaic.version = 11 : i64} {
  func.func @_slstm_kernel(%arg0: i32, %arg1: i32, %arg2: memref<32x48xf32, #tpu.memory_space<vmem>>, %arg3: memref<3x32x128xf32, #tpu.memory_space<vmem>>, %arg4: memref<48x512xf32, #tpu.memory_space<vmem>>, %arg5: memref<1x512xf32, #tpu.memory_space<vmem>>, %arg6: memref<4x32x128xf32, #tpu.memory_space<vmem>>) attributes {dimension_semantics = [#tpu.dimension_semantics<parallel>, #tpu.dimension_semantics<parallel>], iteration_bounds = array<i64: 1, 1>, scalar_prefetch = 0 : i64, scratch_operands = 0 : i64, tpu.core_type = #tpu.core_type<tc>, window_params = [{transform_indices = @transform_0, window_bounds = array<i64: 32, 48>}, {transform_indices = @transform_1, window_bounds = array<i64: 3, 32, 128>}, {transform_indices = @transform_2, window_bounds = array<i64: 48, 512>}, {transform_indices = @transform_3, window_bounds = array<i64: 1, 512>}, {transform_indices = @transform_4, window_bounds = array<i64: 4, 32, 128>}]} {
    %c0 = arith.constant 0 : index
    %c0_0 = arith.constant 0 : index
    %0 = vector.load %arg2[%c0, %c0_0] : memref<32x48xf32, #tpu.memory_space<vmem>>, vector<32x48xf32>
    %c0_1 = arith.constant 0 : index
    %c0_2 = arith.constant 0 : index
    %1 = vector.load %arg4[%c0_1, %c0_2] : memref<48x512xf32, #tpu.memory_space<vmem>>, vector<48x512xf32>
    %cst = arith.constant dense<0.000000e+00> : vector<32x512xf32>
    %2 = tpu.matmul %0, %1, %cst {dimension_numbers = #tpu.dot_dimension_numbers<[1], [0], [0], [1], [0, 0, 1, 1], [], []>} : vector<32x48xf32>, vector<48x512xf32>, vector<32x512xf32> -> vector<32x512xf32>
    %c0_3 = arith.constant 0 : index
    %c0_4 = arith.constant 0 : index
    %3 = vector.load %arg5[%c0_3, %c0_4] : memref<1x512xf32, #tpu.memory_space<vmem>>, vector<1x512xf32>
    %4 = vector.broadcast %3 : vector<1x512xf32> to vector<32x512xf32>
    %5 = arith.addf %2, %4 : vector<32x512xf32>
    %6 = vector.extract_strided_slice %5 {offsets = [0, 0], sizes = [32, 128], strides = [1, 1]} : vector<32x512xf32> to vector<32x128xf32>
    %7 = vector.extract_strided_slice %5 {offsets = [0, 128], sizes = [32, 128], strides = [1, 1]} : vector<32x512xf32> to vector<32x128xf32>
    %8 = vector.extract_strided_slice %5 {offsets = [0, 256], sizes = [32, 128], strides = [1, 1]} : vector<32x512xf32> to vector<32x128xf32>
    %9 = vector.extract_strided_slice %5 {offsets = [0, 384], sizes = [32, 128], strides = [1, 1]} : vector<32x512xf32> to vector<32x128xf32>
    %c0_5 = arith.constant 0 : index
    %c0_6 = arith.constant 0 : index
    %c0_7 = arith.constant 0 : index
    %10 = vector.load %arg3[%c0_5, %c0_6, %c0_7] : memref<3x32x128xf32, #tpu.memory_space<vmem>>, vector<1x32x128xf32>
    %11 = vector.shape_cast %10 : vector<1x32x128xf32> to vector<32x128xf32>
    %c1 = arith.constant 1 : index
    %c0_8 = arith.constant 0 : index
    %c0_9 = arith.constant 0 : index
    %12 = vector.load %arg3[%c1, %c0_8, %c0_9] : memref<3x32x128xf32, #tpu.memory_space<vmem>>, vector<1x32x128xf32>
    %13 = vector.shape_cast %12 : vector<1x32x128xf32> to vector<32x128xf32>
    %c2 = arith.constant 2 : index
    %c0_10 = arith.constant 0 : index
    %c0_11 = arith.constant 0 : index
    %14 = vector.load %arg3[%c2, %c0_10, %c0_11] : memref<3x32x128xf32, #tpu.memory_space<vmem>>, vector<1x32x128xf32>
    %15 = vector.shape_cast %14 : vector<1x32x128xf32> to vector<32x128xf32>
    %16 = math.tanh %6 : vector<32x128xf32>
    %17 = arith.negf %9 : vector<32x128xf32>
    %18 = math.exp %17 : vector<32x128xf32>
    %cst_12 = arith.constant 1.000000e+00 : f32
    %19 = vector.broadcast %cst_12 : f32 to vector<32x128xf32>
    %20 = arith.addf %19, %18 : vector<32x128xf32>
    %21 = arith.divf %19, %20 : vector<32x128xf32>
    %22 = math.absf %8 : vector<32x128xf32>
    %cst_13 = arith.constant 0.000000e+00 : f32
    %23 = vector.broadcast %cst_13 : f32 to vector<32x128xf32>
    %24 = arith.subf %23, %22 : vector<32x128xf32>
    %25 = math.exp %24 : vector<32x128xf32>
    %cst_14 = arith.constant 1.000000e+00 : f32
    %26 = vector.broadcast %cst_14 : f32 to vector<32x128xf32>
    %27 = arith.addf %26, %25 : vector<32x128xf32>
    %28 = tpu.reciprocal %27 {approx = true} : vector<32x128xf32> -> vector<32x128xf32>
    %29 = arith.mulf %27, %28 : vector<32x128xf32>
    %cst_15 = arith.constant 2.000000e+00 : f32
    %30 = vector.broadcast %cst_15 : f32 to vector<32x128xf32>
    %31 = arith.subf %30, %29 : vector<32x128xf32>
    %32 = arith.mulf %28, %31 : vector<32x128xf32>
    %cst_16 = arith.constant 0.000000e+00 : f32
    %33 = vector.broadcast %cst_16 : f32 to vector<32x128xf32>
    %34 = arith.cmpf oge, %8, %33 : vector<32x128xf32>
    %35 = arith.mulf %25, %32 : vector<32x128xf32>
    %36 = arith.select %34, %32, %35 : vector<32x128xi1>, vector<32x128xf32>
    %cst_17 = arith.constant 0.000000e+00 : f32
    %37 = vector.broadcast %cst_17 : f32 to vector<32x128xf32>
    %38 = arith.minimumf %8, %37 : vector<32x128xf32>
    %39 = math.log1p %25 : vector<32x128xf32>
    %40 = arith.subf %38, %39 : vector<32x128xf32>
    %41 = arith.addf %40, %15 : vector<32x128xf32>
    %42 = arith.maximumf %41, %7 : vector<32x128xf32>
    %43 = arith.subf %7, %42 : vector<32x128xf32>
    %44 = math.exp %43 : vector<32x128xf32>
    %45 = arith.mulf %36, %11 : vector<32x128xf32>
    %46 = arith.mulf %44, %16 : vector<32x128xf32>
    %47 = arith.addf %45, %46 : vector<32x128xf32>
    %48 = arith.mulf %36, %13 : vector<32x128xf32>
    %49 = arith.addf %48, %44 : vector<32x128xf32>
    %50 = tpu.reciprocal %49 {approx = true} : vector<32x128xf32> -> vector<32x128xf32>
    %51 = arith.mulf %49, %50 : vector<32x128xf32>
    %cst_18 = arith.constant 2.000000e+00 : f32
    %52 = vector.broadcast %cst_18 : f32 to vector<32x128xf32>
    %53 = arith.subf %52, %51 : vector<32x128xf32>
    %54 = arith.mulf %50, %53 : vector<32x128xf32>
    %55 = arith.mulf %47, %54 : vector<32x128xf32>
    %56 = arith.mulf %21, %55 : vector<32x128xf32>
    %c0_19 = arith.constant 0 : index
    %c0_20 = arith.constant 0 : index
    %c0_21 = arith.constant 0 : index
    %57 = vector.load %arg6[%c0_19, %c0_20, %c0_21] : memref<4x32x128xf32, #tpu.memory_space<vmem>>, vector<1x32x128xf32>
    %58 = vector.shape_cast %57 : vector<1x32x128xf32> to vector<32x128xf32>
    %59 = vector.shape_cast %56 : vector<32x128xf32> to vector<1x32x128xf32>
    tpu.vector_store %arg6[%c0_19, %c0_20, %c0_21], %59 {strides = array<i32>} : memref<4x32x128xf32, #tpu.memory_space<vmem>>, vector<1x32x128xf32>,
    %c1_22 = arith.constant 1 : index
    %c0_23 = arith.constant 0 : index
    %c0_24 = arith.constant 0 : index
    %60 = vector.load %arg6[%c1_22, %c0_23, %c0_24] : memref<4x32x128xf32, #tpu.memory_space<vmem>>, vector<1x32x128xf32>
    %61 = vector.shape_cast %60 : vector<1x32x128xf32> to vector<32x128xf32>
    %62 = vector.shape_cast %47 : vector<32x128xf32> to vector<1x32x128xf32>
    tpu.vector_store %arg6[%c1_22, %c0_23, %c0_24], %62 {strides = array<i32>} : memref<4x32x128xf32, #tpu.memory_space<vmem>>, vector<1x32x128xf32>,
    %c2_25 = arith.constant 2 : index
    %c0_26 = arith.constant 0 : index
    %c0_27 = arith.constant 0 : index
    %63 = vector.load %arg6[%c2_25, %c0_26, %c0_27] : memref<4x32x128xf32, #tpu.memory_space<vmem>>, vector<1x32x128xf32>
    %64 = vector.shape_cast %63 : vector<1x32x128xf32> to vector<32x128xf32>
    %65 = vector.shape_cast %49 : vector<32x128xf32> to vector<1x32x128xf32>
    tpu.vector_store %arg6[%c2_25, %c0_26, %c0_27], %65 {strides = array<i32>} : memref<4x32x128xf32, #tpu.memory_space<vmem>>, vector<1x32x128xf32>,
    %c3 = arith.constant 3 : index
    %c0_28 = arith.constant 0 : index
    %c0_29 = arith.constant 0 : index
    %66 = vector.load %arg6[%c3, %c0_28, %c0_29] : memref<4x32x128xf32, #tpu.memory_space<vmem>>, vector<1x32x128xf32>
    %67 = vector.shape_cast %66 : vector<1x32x128xf32> to vector<32x128xf32>
    %68 = vector.shape_cast %42 : vector<32x128xf32> to vector<1x32x128xf32>
    tpu.vector_store %arg6[%c3, %c0_28, %c0_29], %68 {strides = array<i32>} : memref<4x32x128xf32, #tpu.memory_space<vmem>>, vector<1x32x128xf32>,
    return
  }
  func.func @transform_0(%arg0: i32, %arg1: i32) -> (i32, i32) {
    %c0_i32 = arith.constant 0 : i32
    %c0_i32_0 = arith.constant 0 : i32
    return %arg0, %c0_i32 : i32, i32
  }
  func.func @transform_1(%arg0: i32, %arg1: i32) -> (i32, i32, i32) {
    %c0_i32 = arith.constant 0 : i32
    %c0_i32_0 = arith.constant 0 : i32
    return %c0_i32, %arg0, %arg1 : i32, i32, i32
  }
  func.func @transform_2(%arg0: i32, %arg1: i32) -> (i32, i32) {
    %c0_i32 = arith.constant 0 : i32
    %c0_i32_0 = arith.constant 0 : i32
    return %c0_i32, %arg1 : i32, i32
  }
  func.func @transform_3(%arg0: i32, %arg1: i32) -> (i32, i32) {
    %c0_i32 = arith.constant 0 : i32
    %c0_i32_0 = arith.constant 0 : i32
    return %c0_i32, %arg1 : i32, i32
  }
  func.func @transform_4(%arg0: i32, %arg1: i32) -> (i32, i32, i32) {
    %c0_i32 = arith.constant 0 : i32
    %c0_i32_0 = arith.constant 0 : i32
    return %c0_i32, %arg0, %arg1 : i32, i32, i32
  }
}

</mosaic_0001>

<llo_original>
// kernel: tpu_custom_call.1
$region0: #{tpu_custom_call.1}
  #allocation0 [shape = 'u32[]', space=smem, size = 0x4, offset = 0x4, fixed_abs, tag = 'smem constant byte address 0x4 - core index']
  #allocation1 [shape = 'u32[144,128]{1,0:T(1,128)}', space=vmem, size = 0x12000, scoped, tag = 'internal scratch']
  %s0 = inlined_call_operand.hbm [shape: f32[32,48], index: 0, kind: input, shape index: {}]
  %s1 = inlined_call_operand.hbm [shape: f32[3,32,128], index: 1, kind: input, shape index: {}]
  %s2 = inlined_call_operand.hbm [shape: f32[48,512], index: 2, kind: input, shape index: {}]
  %s3 = inlined_call_operand.vmem [shape: f32[1,512], index: 3, kind: input, shape index: {}]
  %s4 = inlined_call_operand.hbm [shape: f32[4,32,128], index: 4, kind: output, shape index: {}]
  %s5 = sld [smem:[#allocation0]]
  $region38: #{tpu_custom_call.1} parent=0
    _
  %s7 = ssub.s32 1, %s5
  %s8 = scalar_select 0, %s7, %s5
  $region1: #{tpu_custom_call.1} parent=0
    #allocation2 [shape = 'u8[16384]{0}', space=vmem, size = 0x4000, scoped, tag = 'input window, operand 0, single buffered']
    #allocation3 [shape = 's32[1]{0}', space=sflag, size = 0x4, scoped, tag = 'scoped memory for tpu_custom_call.1']
    #allocation4 [shape = 's32[1]{0}', space=sflag, size = 0x4, scoped, tag = 'scoped memory for tpu_custom_call.1']
    #allocation5 [shape = 'u8[49152]{0}', space=vmem, size = 0xc000, scoped, tag = 'input window, operand 1, single buffered']
    #allocation6 [shape = 's32[1]{0}', space=sflag, size = 0x4, scoped, tag = 'scoped memory for tpu_custom_call.1']
    #allocation7 [shape = 'u8[98304]{0}', space=vmem, size = 0x18000, scoped, tag = 'input window, operand 2, single buffered']
    #allocation8 [shape = 'u8[65536]{0}', space=vmem, size = 0x10000, scoped, tag = 'output window, operand 0, single buffered']
    %9 = vsyncpa [#allocation3], 0
    %10 = vsyncpa [#allocation6], 0
    %11 = vsyncpa [#allocation4], 0
    // Predicated region
    $region2: #{tpu_custom_call.1} parent=1 // pred_check
      _
    $region3: #{tpu_custom_call.1} parent=1 // pred_check_branch
      %13 = sbr.rel (0) target = $region5
    $region4: #{tpu_custom_call.1} parent=1 // pred_region
      %s15 = ssub.s32 512, 512
      %16 = vsyncadd [#allocation3], %s15
      %s17 = sshll.u32 [#allocation2], 4
      %s18 = int_to_ptr.vmem [resolvable:$true] %s17
      %23 = dma.hbm_to_vmem [thread:$0]  %s0, 512, %s18, [#allocation3], 128, 128, 8
    $region5: #{tpu_custom_call.1} parent=1 // pred_fallthru
      _
    // Predicated region
    $region6: #{tpu_custom_call.1} parent=1 // pred_check
      _
    $region7: #{tpu_custom_call.1} parent=1 // pred_check_branch
      %25 = sbr.rel (0) target = $region9
    $region8: #{tpu_custom_call.1} parent=1 // pred_region
      %s27 = ssub.s32 1536, 1536
      %28 = vsyncadd [#allocation6], %s27
      %s29 = sshll.u32 [#allocation5], 4
      %s30 = int_to_ptr.vmem [resolvable:$true] %s29
      %35 = dma.hbm_to_vmem [thread:$0]  %s1, 1536, %s30, [#allocation6], 128, 128, 8
    $region9: #{tpu_custom_call.1} parent=1 // pred_fallthru
      _
    // Predicated region
    $region10: #{tpu_custom_call.1} parent=1 // pred_check
      _
    $region11: #{tpu_custom_call.1} parent=1 // pred_check_branch
      %37 = sbr.rel (0) target = $region13
    $region12: #{tpu_custom_call.1} parent=1 // pred_region
      %s39 = ssub.s32 3072, 3072
      %40 = vsyncadd [#allocation6], %s39
      %s41 = sshll.u32 [#allocation7], 4
      %s42 = int_to_ptr.vmem [resolvable:$true] %s41
      %47 = dma.hbm_to_vmem [thread:$0]  %s2, 3072, %s42, [#allocation6], 512, 512, 32
    $region13: #{tpu_custom_call.1} parent=1 // pred_fallthru
      _
    // Predicated region
    $region14: #{tpu_custom_call.1} parent=1 // pred_check
      _
    $region15: #{tpu_custom_call.1} parent=1 // pred_check_branch
      %49 = sbr.rel (0) target = $region17
    $region16: #{tpu_custom_call.1} parent=1 // pred_region
      _
    $region17: #{tpu_custom_call.1} parent=1 // pred_fallthru
      _
    // Predicated region
    $region18: #{tpu_custom_call.1} parent=1 // pred_check
      _
    $region19: #{tpu_custom_call.1} parent=1 // pred_check_branch
      %51 = sbr.rel (0) target = $region21
    $region20: #{tpu_custom_call.1} parent=1 // pred_region
      %52 = dma.done [#allocation3], 512
    $region21: #{tpu_custom_call.1} parent=1 // pred_fallthru
      _
    // Predicated region
    $region22: #{tpu_custom_call.1} parent=1 // pred_check
      _
    $region23: #{tpu_custom_call.1} parent=1 // pred_check_branch
      %54 = sbr.rel (0) target = $region25
    $region24: #{tpu_custom_call.1} parent=1 // pred_region
      %55 = dma.done [#allocation6], 1536
    $region25: #{tpu_custom_call.1} parent=1 // pred_fallthru
      _
    // Predicated region
    $region26: #{tpu_custom_call.1} parent=1 // pred_check
      _
    $region27: #{tpu_custom_call.1} parent=1 // pred_check_branch
      %57 = sbr.rel (0) target = $region29
    $region28: #{tpu_custom_call.1} parent=1 // pred_region
      %58 = dma.done [#allocation6], 3072
    $region29: #{tpu_custom_call.1} parent=1 // pred_fallthru
      _
    %v59 = vld [vmem:[#allocation2] sm:$0xff]
    %v60 = vld [vmem:[#allocation2 + $0x8] sm:$0xff]
    %v61 = vld [vmem:[#allocation2 + $0x10] sm:$0xff]
    %v62 = vld [vmem:[#allocation2 + $0x18] sm:$0xff]
    %v63 = vld [vmem:[#allocation7] sm:$0xff]
    %v64 = vld [vmem:[#allocation7 + $0x8] sm:$0xff]
    %v65 = vld [vmem:[#allocation7 + $0x10] sm:$0xff]
    %v66 = vld [vmem:[#allocation7 + $0x18] sm:$0xff]
    %v67 = vld [vmem:[#allocation7 + $0x20] sm:$0xff]
    %v68 = vld [vmem:[#allocation7 + $0x28] sm:$0xff]
    %v69 = vld [vmem:[#allocation7 + $0x30] sm:$0xff]
    %v70 = vld [vmem:[#allocation7 + $0x38] sm:$0xff]
    %v71 = vld [vmem:[#allocation7 + $0x40] sm:$0xff]
    %v72 = vld [vmem:[#allocation7 + $0x48] sm:$0xff]
    %v73 = vld [vmem:[#allocation7 + $0x50] sm:$0xff]
    %v74 = vld [vmem:[#allocation7 + $0x58] sm:$0xff]
    %v75 = vld [vmem:[#allocation7 + $0x60] sm:$0xff]
    %v76 = vld [vmem:[#allocation7 + $0x68] sm:$0xff]
    %v77 = vld [vmem:[#allocation7 + $0x70] sm:$0xff]
    %v78 = vld [vmem:[#allocation7 + $0x78] sm:$0xff]
    %v79 = vld [vmem:[#allocation7 + $0x80] sm:$0xff]
    %v80 = vld [vmem:[#allocation7 + $0x88] sm:$0xff]
    %v81 = vld [vmem:[#allocation7 + $0x90] sm:$0xff]
    %v82 = vld [vmem:[#allocation7 + $0x98] sm:$0xff]
    %v83 = vld [vmem:[#allocation7 + $0xa0] sm:$0xff]
    %v84 = vld [vmem:[#allocation7 + $0xa8] sm:$0xff]
    %v85 = vld [vmem:[#allocation7 + $0xb0] sm:$0xff]
    %v86 = vld [vmem:[#allocation7 + $0xb8] sm:$0xff]
    %v87 = vld [vmem:[%s3] sm:$0xf]
    %v89 = vlaneseq
    %v90 = vshrl.u32 %v89, 7
    %v91 = vsub.s32 0, %v90
    %v92 = vrot.slane %v87, %v91
    %v93 = vlaneseq
    %v94 = vshrl.u32 %v93, 7
    %v95 = vsub.s32 1, %v94
    %v96 = vrot.slane %v87, %v95
    %v97 = vlaneseq
    %v98 = vshrl.u32 %v97, 7
    %v99 = vsub.s32 2, %v98
    %v100 = vrot.slane %v87, %v99
    %v101 = vlaneseq
    %v102 = vshrl.u32 %v101, 7
    %v103 = vsub.s32 3, %v102
    %v104 = vrot.slane %v87, %v103
    %vm109 = vcmask 392192
    %v111 = vsel %vm109, %v59, 0
    %v114 = vsel %vm109, %v60, 0
    %v117 = vsel %vm109, %v61, 0
    %v120 = vsel %vm109, %v62, 0
    %122 = vmatprep.subr.mxu0 0.0
    %123 = vmatpush1.msra.mxu0 0.0
    %124 = vmatprep.subr.mxu0 0.0
    %125 = vmatpush1.msra.mxu0 0.0
    %126 = vmatprep.subr.mxu0 0.0
    %127 = vmatpush1.msra.mxu0 0.0
    %128 = vmatprep.subr.mxu0 0.0
    %129 = vmatpush1.msra.mxu0 0.0
    %130 = vmatprep.subr.mxu0 0.0
    %131 = vmatpush1.msra.mxu0 0.0
    %132 = vmatprep.subr.mxu0 0.0
    %133 = vmatpush1.msra.mxu0 0.0
    %134 = vmatprep.subr.mxu0 0.0
    %135 = vmatpush1.msra.mxu0 0.0
    %136 = vmatprep.subr.mxu0 0.0
    %137 = vmatpush1.msra.mxu0 0.0
    %138 = vmatprep.subr.mxu0 0.0
    %139 = vmatpush1.msra.mxu0 0.0
    %140 = vmatprep.subr.mxu0 0.0
    %141 = vmatpush1.msra.mxu0 0.0
    %142 = vmatprep.subr.mxu0 %v84
    %143 = vmatpush1.msra.mxu0 %v83
    %144 = vmatprep.subr.mxu0 %v80
    %145 = vmatpush1.msra.mxu0 %v79
    %146 = vmatprep.subr.mxu0 %v76
    %147 = vmatpush1.msra.mxu0 %v75
    %148 = vmatprep.subr.mxu0 %v72
    %149 = vmatpush1.msra.mxu0 %v71
    %150 = vmatprep.subr.mxu0 %v68
    %151 = vmatpush1.msra.mxu0 %v67
    %152 = vmatprep.subr.mxu0 %v64
    %153 = vmatpush1.msra.mxu0 %v63
    %154 = vmatprep.subr.mxu0 0.0
    %155 = vmatpush2.msra.mxu0 0.0
    %156 = vmatprep.subr.mxu0 0.0
    %157 = vmatpush2.msra.mxu0 0.0
    %158 = vmatprep.subr.mxu0 0.0
    %159 = vmatpush2.msra.mxu0 0.0
    %160 = vmatprep.subr.mxu0 0.0
    %161 = vmatpush2.msra.mxu0 0.0
    %162 = vmatprep.subr.mxu0 0.0
    %163 = vmatpush2.msra.mxu0 0.0
    %164 = vmatprep.subr.mxu0 0.0
    %165 = vmatpush2.msra.mxu0 0.0
    %166 = vmatprep.subr.mxu0 0.0
    %167 = vmatpush2.msra.mxu0 0.0
    %168 = vmatprep.subr.mxu0 0.0
    %169 = vmatpush2.msra.mxu0 0.0
    %170 = vmatprep.subr.mxu0 0.0
    %171 = vmatpush2.msra.mxu0 0.0
    %172 = vmatprep.subr.mxu0 0.0
    %173 = vmatpush2.msra.mxu0 0.0
    %174 = vmatprep.subr.mxu0 0.0
    %175 = vmatpush2.msra.mxu0 0.0
    %176 = vmatprep.subr.mxu0 0.0
    %177 = vmatpush2.msra.mxu0 0.0
    %178 = vmatprep.subr.mxu0 0.0
    %179 = vmatpush2.msra.mxu0 0.0
    %180 = vmatprep.subr.mxu0 0.0
    %181 = vmatpush2.msra.mxu0 0.0
    %182 = vmatprep.subr.mxu0 0.0
    %183 = vmatpush2.msra.mxu0 0.0
    %184 = vmatprep.subr.mxu0 0.0
    %185 = vmatpush2.msra.mxu0 0.0
    %186 = vmatprep.mubr.f32.mxu0 0.0
    %187 = vmatmul.mubr.f32.gmra.mxu0 %v111
    %v188 = vpop.f32.mrf.mxu0
    %v189 = vadd.f32 %v92, %v188
    %v190 = vpop.f32.mrf.mxu0
    %v191 = vadd.f32 %v96, %v190
    %192 = vmatprep.mubr.f32.mxu0 0.0
    %193 = vmatmul.mubr.f32.gmra.mxu0 %v114
    %v194 = vpop.f32.mrf.mxu0
    %v195 = vadd.f32 %v92, %v194
    %v196 = vpop.f32.mrf.mxu0
    %v197 = vadd.f32 %v96, %v196
    %198 = vmatprep.mubr.f32.mxu0 0.0
    %199 = vmatmul.mubr.f32.gmra.mxu0 %v117
    %v200 = vpop.f32.mrf.mxu0
    %v201 = vadd.f32 %v92, %v200
    %v202 = vpop.f32.mrf.mxu0
    %v203 = vadd.f32 %v96, %v202
    %204 = vmatprep.mubr.f32.mxu0 0.0
    %205 = vmatmul.mubr.f32.gmra.mxu0 %v120
    %v206 = vpop.f32.mrf.mxu0
    %v207 = vadd.f32 %v92, %v206
    %v208 = vpop.f32.mrf.mxu0
    %v209 = vadd.f32 %v96, %v208
    %210 = vdwg.mxu0
    %211 = vmatprep.subr.mxu0 0.0
    %212 = vmatpush1.msra.mxu0 0.0
    %213 = vmatprep.subr.mxu0 0.0
    %214 = vmatpush1.msra.mxu0 0.0
    %215 = vmatprep.subr.mxu0 0.0
    %216 = vmatpush1.msra.mxu0 0.0
    %217 = vmatprep.subr.mxu0 0.0
    %218 = vmatpush1.msra.mxu0 0.0
    %219 = vmatprep.subr.mxu0 0.0
    %220 = vmatpush1.msra.mxu0 0.0
    %221 = vmatprep.subr.mxu0 0.0
    %222 = vmatpush1.msra.mxu0 0.0
    %223 = vmatprep.subr.mxu0 0.0
    %224 = vmatpush1.msra.mxu0 0.0
    %225 = vmatprep.subr.mxu0 0.0
    %226 = vmatpush1.msra.mxu0 0.0
    %227 = vmatprep.subr.mxu0 0.0
    %228 = vmatpush1.msra.mxu0 0.0
    %229 = vmatprep.subr.mxu0 0.0
    %230 = vmatpush1.msra.mxu0 0.0
    %231 = vmatprep.subr.mxu0 %v86
    %232 = vmatpush1.msra.mxu0 %v85
    %233 = vmatprep.subr.mxu0 %v82
    %234 = vmatpush1.msra.mxu0 %v81
    %235 = vmatprep.subr.mxu0 %v78
    %236 = vmatpush1.msra.mxu0 %v77
    %237 = vmatprep.subr.mxu0 %v74
    %238 = vmatpush1.msra.mxu0 %v73
    %239 = vmatprep.subr.mxu0 %v70
    %240 = vmatpush1.msra.mxu0 %v69
    %241 = vmatprep.subr.mxu0 %v66
    %242 = vmatpush1.msra.mxu0 %v65
    %243 = vmatprep.subr.mxu0 0.0
    %244 = vmatpush2.msra.mxu0 0.0
    %245 = vmatprep.subr.mxu0 0.0
    %246 = vmatpush2.msra.mxu0 0.0
    %247 = vmatprep.subr.mxu0 0.0
    %248 = vmatpush2.msra.mxu0 0.0
    %249 = vmatprep.subr.mxu0 0.0
    %250 = vmatpush2.msra.mxu0 0.0
    %251 = vmatprep.subr.mxu0 0.0
    %252 = vmatpush2.msra.mxu0 0.0
    %253 = vmatprep.subr.mxu0 0.0
    %254 = vmatpush2.msra.mxu0 0.0
    %255 = vmatprep.subr.mxu0 0.0
    %256 = vmatpush2.msra.mxu0 0.0
    %257 = vmatprep.subr.mxu0 0.0
    %258 = vmatpush2.msra.mxu0 0.0
    %259 = vmatprep.subr.mxu0 0.0
    %260 = vmatpush2.msra.mxu0 0.0
    %261 = vmatprep.subr.mxu0 0.0
    %262 = vmatpush2.msra.mxu0 0.0
    %263 = vmatprep.subr.mxu0 0.0
    %264 = vmatpush2.msra.mxu0 0.0
    %265 = vmatprep.subr.mxu0 0.0
    %266 = vmatpush2.msra.mxu0 0.0
    %267 = vmatprep.subr.mxu0 0.0
    %268 = vmatpush2.msra.mxu0 0.0
    %269 = vmatprep.subr.mxu0 0.0
    %270 = vmatpush2.msra.mxu0 0.0
    %271 = vmatprep.subr.mxu0 0.0
    %272 = vmatpush2.msra.mxu0 0.0
    %273 = vmatprep.subr.mxu0 0.0
    %274 = vmatpush2.msra.mxu0 0.0
    %275 = vmatprep.mubr.f32.mxu0 0.0
    %276 = vmatmul.mubr.f32.gmra.mxu0 %v111
    %v277 = vpop.f32.mrf.mxu0
    %v278 = vadd.f32 %v100, %v277
    %v279 = vpop.f32.mrf.mxu0
    %v280 = vadd.f32 %v104, %v279
    %281 = vmatprep.mubr.f32.mxu0 0.0
    %282 = vmatmul.mubr.f32.gmra.mxu0 %v114
    %v283 = vpop.f32.mrf.mxu0
    %v284 = vadd.f32 %v100, %v283
    %v285 = vpop.f32.mrf.mxu0
    %v286 = vadd.f32 %v104, %v285
    %287 = vmatprep.mubr.f32.mxu0 0.0
    %288 = vmatmul.mubr.f32.gmra.mxu0 %v117
    %v289 = vpop.f32.mrf.mxu0
    %v290 = vadd.f32 %v100, %v289
    %v291 = vpop.f32.mrf.mxu0
    %v292 = vadd.f32 %v104, %v291
    %293 = vmatprep.mubr.f32.mxu0 0.0
    %294 = vmatmul.mubr.f32.gmra.mxu0 %v120
    %v295 = vpop.f32.mrf.mxu0
    %v296 = vadd.f32 %v100, %v295
    %v297 = vpop.f32.mrf.mxu0
    %v298 = vadd.f32 %v104, %v297
    %299 = vdwg.mxu0
    %v300 = vld [vmem:[#allocation5] sm:$0xff]
    %v301 = vld [vmem:[#allocation5 + $0x8] sm:$0xff]
    %v302 = vld [vmem:[#allocation5 + $0x10] sm:$0xff]
    %v303 = vld [vmem:[#allocation5 + $0x18] sm:$0xff]
    %s304 = scalar_lea.vmem [#allocation5], 32
    %v305 = vld [vmem:[%s304] sm:$0xff]
    %v306 = vld [vmem:[%s304 + $0x8] sm:$0xff]
    %v307 = vld [vmem:[%s304 + $0x10] sm:$0xff]
    %v308 = vld [vmem:[%s304 + $0x18] sm:$0xff]
    %s309 = scalar_lea.vmem [#allocation5], 64
    %v310 = vld [vmem:[%s309] sm:$0xff]
    %v311 = vld [vmem:[%s309 + $0x8] sm:$0xff]
    %v312 = vld [vmem:[%s309 + $0x10] sm:$0xff]
    %v313 = vld [vmem:[%s309 + $0x18] sm:$0xff]
    %v314 = vtanh.pop %v189
    %v315 = vtanh.pop %v195
    %v316 = vtanh.pop %v201
    %v317 = vtanh.pop %v207
    %v318 = vxor.u32 %v280, 2147483648
    %v319 = vxor.u32 %v286, 2147483648
    %v320 = vxor.u32 %v292, 2147483648
    %v321 = vxor.u32 %v298, 2147483648
    %v322 = vmul.f32 %v318, 1.442695
    %v323 = vpow.pop %v322
    %v324 = vmul.f32 %v319, 1.442695
    %v325 = vpow.pop %v324
    %v326 = vmul.f32 %v320, 1.442695
    %v327 = vpow.pop %v326
    %v328 = vmul.f32 %v321, 1.442695
    %v329 = vpow.pop %v328
    %v330 = vadd.f32 %v323, 1.0
    %v331 = vadd.f32 %v325, 1.0
    %v332 = vadd.f32 %v327, 1.0
    %v333 = vadd.f32 %v329, 1.0
    %v334 = vrcp.pop %v330
    %v335 = vmul.f32 1.0, %v334
    %v336 = vrcp.pop %v331
    %v337 = vmul.f32 1.0, %v336
    %v338 = vrcp.pop %v332
    %v339 = vmul.f32 1.0, %v338
    %v340 = vrcp.pop %v333
    %v341 = vmul.f32 1.0, %v340
    %v342 = vand.u32 2147483647, %v278
    %v343 = vand.u32 2147483647, %v284
    %v344 = vand.u32 2147483647, %v290
    %v345 = vand.u32 2147483647, %v296
    %v346 = vsub.f32 0.0, %v342
    %v347 = vsub.f32 0.0, %v343
    %v348 = vsub.f32 0.0, %v344
    %v349 = vsub.f32 0.0, %v345
    %v350 = vmul.f32 %v346, 1.442695
    %v351 = vpow.pop %v350
    %v352 = vmul.f32 %v347, 1.442695
    %v353 = vpow.pop %v352
    %v354 = vmul.f32 %v348, 1.442695
    %v355 = vpow.pop %v354
    %v356 = vmul.f32 %v349, 1.442695
    %v357 = vpow.pop %v356
    %v358 = vadd.f32 %v351, 1.0
    %v359 = vadd.f32 %v353, 1.0
    %v360 = vadd.f32 %v355, 1.0
    %v361 = vadd.f32 %v357, 1.0
    %v362 = vrcp.pop %v358
    %v363 = vrcp.pop %v359
    %v364 = vrcp.pop %v360
    %v365 = vrcp.pop %v361
    %v366 = vmul.f32 %v358, %v362
    %v367 = vmul.f32 %v359, %v363
    %v368 = vmul.f32 %v360, %v364
    %v369 = vmul.f32 %v361, %v365
    %v370 = vsub.f32 2.0, %v366
    %v371 = vsub.f32 2.0, %v367
    %v372 = vsub.f32 2.0, %v368
    %v373 = vsub.f32 2.0, %v369
    %v374 = vmul.f32 %v362, %v370
    %v375 = vmul.f32 %v363, %v371
    %v376 = vmul.f32 %v364, %v372
    %v377 = vmul.f32 %v365, %v373
    %vm378 = vcmp.ge.f32.partialorder %v278, 0.0
    %vm379 = vcmp.ge.f32.partialorder %v284, 0.0
    %vm380 = vcmp.ge.f32.partialorder %v290, 0.0
    %vm381 = vcmp.ge.f32.partialorder %v296, 0.0
    %v382 = vmul.f32 %v351, %v374
    %v383 = vmul.f32 %v353, %v375
    %v384 = vmul.f32 %v355, %v376
    %v385 = vmul.f32 %v357, %v377
    %v386 = vsel %vm378, %v374, %v382
    %v387 = vsel %vm379, %v375, %v383
    %v388 = vsel %vm380, %v376, %v384
    %v389 = vsel %vm381, %v377, %v385
    %v390 = vmin.f32 %v278, 0.0
    %v391 = vmin.f32 %v284, 0.0
    %v392 = vmin.f32 %v290, 0.0
    %v393 = vmin.f32 %v296, 0.0
    %v394 = vadd.f32 %v351, 1.0
    %v395 = vlog2.pop %v394
    %v396 = vmul.f32 %v395, 0.6931472
    %v397 = vmul.f32 -0.5, %v351
    %v398 = vadd.f32 %v397, 1.0
    %v399 = vmul.f32 %v398, %v351
    %v400 = vand.u32 2147483647, %v351
    %vm401 = vcmp.lt.f32.partialorder %v400, 0.0004427343
    %v402 = vsel %vm401, %v399, %v396
    %v403 = vadd.f32 %v353, 1.0
    %v404 = vlog2.pop %v403
    %v405 = vmul.f32 %v404, 0.6931472
    %v406 = vmul.f32 -0.5, %v353
    %v407 = vadd.f32 %v406, 1.0
    %v408 = vmul.f32 %v407, %v353
    %v409 = vand.u32 2147483647, %v353
    %vm410 = vcmp.lt.f32.partialorder %v409, 0.0004427343
    %v411 = vsel %vm410, %v408, %v405
    %v412 = vadd.f32 %v355, 1.0
    %v413 = vlog2.pop %v412
    %v414 = vmul.f32 %v413, 0.6931472
    %v415 = vmul.f32 -0.5, %v355
    %v416 = vadd.f32 %v415, 1.0
    %v417 = vmul.f32 %v416, %v355
    %v418 = vand.u32 2147483647, %v355
    %vm419 = vcmp.lt.f32.partialorder %v418, 0.0004427343
    %v420 = vsel %vm419, %v417, %v414
    %v421 = vadd.f32 %v357, 1.0
    %v422 = vlog2.pop %v421
    %v423 = vmul.f32 %v422, 0.6931472
    %v424 = vmul.f32 -0.5, %v357
    %v425 = vadd.f32 %v424, 1.0
    %v426 = vmul.f32 %v425, %v357
    %v427 = vand.u32 2147483647, %v357
    %vm428 = vcmp.lt.f32.partialorder %v427, 0.0004427343
    %v429 = vsel %vm428, %v426, %v423
    %v430 = vsub.f32 %v390, %v402
    %v431 = vsub.f32 %v391, %v411
    %v432 = vsub.f32 %v392, %v420
    %v433 = vsub.f32 %v393, %v429
    %v434 = vadd.f32 %v430, %v310
    %v435 = vadd.f32 %v431, %v311
    %v436 = vadd.f32 %v432, %v312
    %v437 = vadd.f32 %v433, %v313
    %v438 = vmax.f32 %v434, %v191
    %v439 = vmax.f32 %v435, %v197
    %v440 = vmax.f32 %v436, %v203
    %v441 = vmax.f32 %v437, %v209
    %v442 = vsub.f32 %v191, %v438
    %v443 = vsub.f32 %v197, %v439
    %v444 = vsub.f32 %v203, %v440
    %v445 = vsub.f32 %v209, %v441
    %v446 = vmul.f32 %v442, 1.442695
    %v447 = vpow.pop %v446
    %v448 = vmul.f32 %v443, 1.442695
    %v449 = vpow.pop %v448
    %v450 = vmul.f32 %v444, 1.442695
    %v451 = vpow.pop %v450
    %v452 = vmul.f32 %v445, 1.442695
    %v453 = vpow.pop %v452
    %v454 = vmul.f32 %v386, %v300
    %v455 = vmul.f32 %v387, %v301
    %v456 = vmul.f32 %v388, %v302
    %v457 = vmul.f32 %v389, %v303
    %v458 = vmul.f32 %v447, %v314
    %v459 = vmul.f32 %v449, %v315
    %v460 = vmul.f32 %v451, %v316
    %v461 = vmul.f32 %v453, %v317
    %v462 = vadd.f32 %v454, %v458
    %v463 = vadd.f32 %v455, %v459
    %v464 = vadd.f32 %v456, %v460
    %v465 = vadd.f32 %v457, %v461
    %v466 = vmul.f32 %v386, %v305
    %v467 = vmul.f32 %v387, %v306
    %v468 = vmul.f32 %v388, %v307
    %v469 = vmul.f32 %v389, %v308
    %v470 = vadd.f32 %v466, %v447
    %v471 = vadd.f32 %v467, %v449
    %v472 = vadd.f32 %v468, %v451
    %v473 = vadd.f32 %v469, %v453
    %v474 = vrcp.pop %v470
    %v475 = vrcp.pop %v471
    %v476 = vrcp.pop %v472
    %v477 = vrcp.pop %v473
    %v478 = vmul.f32 %v470, %v474
    %v479 = vmul.f32 %v471, %v475
    %v480 = vmul.f32 %v472, %v476
    %v481 = vmul.f32 %v473, %v477
    %v482 = vsub.f32 2.0, %v478
    %v483 = vsub.f32 2.0, %v479
    %v484 = vsub.f32 2.0, %v480
    %v485 = vsub.f32 2.0, %v481
    %v486 = vmul.f32 %v474, %v482
    %v487 = vmul.f32 %v475, %v483
    %v488 = vmul.f32 %v476, %v484
    %v489 = vmul.f32 %v477, %v485
    %v490 = vmul.f32 %v462, %v486
    %v491 = vmul.f32 %v463, %v487
    %v492 = vmul.f32 %v464, %v488
    %v493 = vmul.f32 %v465, %v489
    %v494 = vmul.f32 %v335, %v490
    %v495 = vmul.f32 %v337, %v491
    %v496 = vmul.f32 %v339, %v492
    %v497 = vmul.f32 %v341, %v493
    %498 = vst [vmem:[#allocation8] sm:$0xff] %v494
    %499 = vst [vmem:[#allocation8 + $0x8] sm:$0xff] %v495
    %500 = vst [vmem:[#allocation8 + $0x10] sm:$0xff] %v496
    %501 = vst [vmem:[#allocation8 + $0x18] sm:$0xff] %v497
    %s502 = scalar_lea.vmem [#allocation8], 32
    %503 = vst [vmem:[%s502] sm:$0xff] %v462
    %504 = vst [vmem:[%s502 + $0x8] sm:$0xff] %v463
    %505 = vst [vmem:[%s502 + $0x10] sm:$0xff] %v464
    %506 = vst [vmem:[%s502 + $0x18] sm:$0xff] %v465
    %s507 = scalar_lea.vmem [#allocation8], 64
    %508 = vst [vmem:[%s507] sm:$0xff] %v470
    %509 = vst [vmem:[%s507 + $0x8] sm:$0xff] %v471
    %510 = vst [vmem:[%s507 + $0x10] sm:$0xff] %v472
    %511 = vst [vmem:[%s507 + $0x18] sm:$0xff] %v473
    %s512 = scalar_lea.vmem [#allocation8], 96
    %513 = vst [vmem:[%s512] sm:$0xff] %v438
    %514 = vst [vmem:[%s512 + $0x8] sm:$0xff] %v439
    %515 = vst [vmem:[%s512 + $0x10] sm:$0xff] %v440
    %516 = vst [vmem:[%s512 + $0x18] sm:$0xff] %v441
    // Predicated region
    $region30: #{tpu_custom_call.1} parent=1 // pred_check
      _
    $region31: #{tpu_custom_call.1} parent=1 // pred_check_branch
      %518 = sbr.rel (0) target = $region33
    $region32: #{tpu_custom_call.1} parent=1 // pred_region
      %s520 = ssub.s32 2048, 2048
      %521 = vsyncadd [#allocation4], %s520
      %s522 = sshll.u32 [#allocation8], 4
      %s523 = int_to_ptr.vmem [resolvable:$true] %s522
      %528 = dma.vmem_to_hbm [thread:$0]  %s523, 2048, %s4, [#allocation4], 128, 128, 8
    $region33: #{tpu_custom_call.1} parent=1 // pred_fallthru
      _
    // Predicated region
    $region34: #{tpu_custom_call.1} parent=1 // pred_check
      _
    $region35: #{tpu_custom_call.1} parent=1 // pred_check_branch
      %530 = sbr.rel (0) target = $region37
    $region36: #{tpu_custom_call.1} parent=1 // pred_region
      %531 = dma.done [#allocation4], 2048
    $region37: #{tpu_custom_call.1} parent=1 // pred_fallthru
      _
    %532 = vsyncpa [#allocation3], 1
    %533 = vsyncpa [#allocation6], 1
    %534 = vsyncpa [#allocation4], 1

</llo_original>
